<compile_context>
chip_gen: v7x
topology: tpu7x:2x2x1
jax: 0.10.0
libtpu: 0.0.40
codegen_flags: <defaults>
</compile_context>

<pallas_src>
import functools

import jax
import jax.numpy as jnp
from jax import lax
from jax.experimental import pallas as pl
from jax.experimental.pallas import tpu as pltpu

LANES = 128
_TARGET_BLOCK_BYTES = 2 * 1024 * 1024   # ~2 MiB per input per grid step
_CHUNK_ROWS = 512                        # inner sub-chunk rows (bounds temps)


def _round_up(a: int, b: int) -> int:
    return (a + b - 1) // b * b


def _ccc_kernel(*refs, n_valid, rows, eps, tile_m, chunk_rows,
                needs_mask, has_tail):
    if has_tail:
        (tail_ref, x_ref, y_ref, out_ref,
         sx_ref, sy_ref, sxx_ref, syy_ref, sxy_ref, x0_ref, y0_ref) = refs
    else:
        (x_ref, y_ref, out_ref,
         sx_ref, sy_ref, sxx_ref, syy_ref, sxy_ref, x0_ref, y0_ref) = refs
        tail_ref = None

    step = pl.program_id(0)
    nsteps = pl.num_programs(0)
    n_chunks = tile_m // chunk_rows

    @pl.when(step == 0)
    def _():
        sx_ref[...] = jnp.zeros_like(sx_ref)
        sy_ref[...] = jnp.zeros_like(sy_ref)
        sxx_ref[...] = jnp.zeros_like(sxx_ref)
        syy_ref[...] = jnp.zeros_like(syy_ref)
        sxy_ref[...] = jnp.zeros_like(sxy_ref)
        # Pilot offsets x[0], y[0] read in-kernel (no wrapper-side gathers).
        x0_ref[...] = x_ref[0:1, 0:1].astype(jnp.float32)
        y0_ref[...] = y_ref[0:1, 0:1].astype(jnp.float32)

    x0 = x0_ref[...]          # (1, 1) f32, broadcast in the subtractions below
    y0 = y0_ref[...]

    def accumulate(masked):
        def chunk_body(c, carry):
            off = c * chunk_rows
            if n_chunks > 1:
                off = pl.multiple_of(off, chunk_rows)
            xv = x_ref[pl.ds(off, chunk_rows), :].astype(jnp.float32) - x0
            yv = y_ref[pl.ds(off, chunk_rows), :].astype(jnp.float32) - y0
            if masked:
                # Row-index mask only (no 32-bit linear-index overflow risk).
                row = lax.broadcasted_iota(jnp.int32, (chunk_rows, LANES), 0)
                valid = (step * tile_m + off + row) < rows
                xv = jnp.where(valid, xv, 0.0)
                yv = jnp.where(valid, yv, 0.0)
            # (chunk,128) -> (chunk//8, 8, 128): axis-0 reduce is pure VALU
            # vreg adds into one-vreg (8,128) accumulators (unmasked stores).
            xr = xv.reshape(chunk_rows // 8, 8, LANES)
            yr = yv.reshape(chunk_rows // 8, 8, LANES)
            sx_ref[...] += jnp.sum(xr, axis=0)
            sy_ref[...] += jnp.sum(yr, axis=0)
            sxx_ref[...] += jnp.sum(xr * xr, axis=0)
            syy_ref[...] += jnp.sum(yr * yr, axis=0)
            sxy_ref[...] += jnp.sum(xr * yr, axis=0)
            return carry

        if n_chunks == 1:
            chunk_body(0, 0)
        else:
            lax.fori_loop(0, n_chunks, chunk_body, 0, unroll=True)

    def finalize():
        def tot(ref):                      # (8,128) -> (1,1); runs once
            return jnp.sum(jnp.sum(ref[...], axis=0, keepdims=True),
                           axis=1, keepdims=True)

        n = jnp.float32(n_valid)
        sx, sy = tot(sx_ref), tot(sy_ref)
        sxx, syy, sxy = tot(sxx_ref), tot(syy_ref), tot(sxy_ref)

        if has_tail:
            # Fold in the <128-element remainder (raw moments passed via SMEM),
            # re-expressed around the same pilot shift.
            cnt = jnp.float32(n_valid - rows * LANES)
            tx, ty = tail_ref[0], tail_ref[1]
            txx, tyy, txy = tail_ref[2], tail_ref[3], tail_ref[4]
            sx = sx + (tx - cnt * x0)
            sy = sy + (ty - cnt * y0)
            sxx = sxx + (txx - 2.0 * x0 * tx + cnt * x0 * x0)
            syy = syy + (tyy - 2.0 * y0 * ty + cnt * y0 * y0)
            sxy = sxy + (txy - x0 * ty - y0 * tx + cnt * x0 * y0)

        mx = sx / n                   # mean(x) - x0
        my = sy / n                   # mean(y) - y0
        vxx = sxx - n * mx * mx       # sum((x - mean_x)^2)   (shift-invariant)
        vyy = syy - n * my * my
        vxy = sxy - n * mx * my
        rho = vxy / (jnp.sqrt(vxx) * jnp.sqrt(vyy) + eps)
        xs2 = vxx / (n - 1.0)         # torch.std -> unbiased (N-1)
        ys2 = vyy / (n - 1.0)
        xs, ys = jnp.sqrt(xs2), jnp.sqrt(ys2)
        dm = (mx - my) + (x0 - y0)    # true mean_x - mean_y
        ccc = 2.0 * rho * xs * ys / (xs2 + ys2 + dm * dm)
        out_ref[...] = 1.0 - ccc

    if needs_mask:
        # Hot path stays completely mask-free; only the last grid step masks
        # the Pallas edge-block garbage rows.
        @pl.when(step < nsteps - 1)
        def _():
            accumulate(False)

        @pl.when(step == nsteps - 1)
        def _():
            accumulate(True)
            finalize()
    else:
        accumulate(False)

        @pl.when(step == nsteps - 1)
        def _():
            finalize()


def ccc_loss(x, y, eps: float = 1e-8):
    """Pallas TPU implementation of CCCLoss.forward (returns scalar 1 - CCC)."""
    assert x.shape == y.shape
    n_valid = int(x.size)

    if n_valid < LANES:
        # Degenerate (<1 lane row) inputs: launch overhead dominates and there
        # is no 128-aligned prefix to stream; use the closed-form math directly.
        # (n == 1 yields NaN from the unbiased std, matching torch.std.)
        return ccc_loss_ref(x, y, eps)

    xf = x.reshape(-1)
    yf = y.reshape(-1)
    if (xf.dtype != yf.dtype or not jnp.issubdtype(xf.dtype, jnp.floating)
            or xf.dtype.itemsize > 4):
        xf = xf.astype(jnp.float32)
        yf = yf.astype(jnp.float32)

    rows = n_valid // LANES
    rem = n_valid - rows * LANES
    has_tail = rem > 0

    # Dtype-aware tile: ~2 MiB of input per grid step, multiple of the sublane
    # granularity (f32 -> 8, bf16 -> 16, int8/fp8 -> 32) and of the sub-chunk.
    itemsize = jnp.dtype(xf.dtype).itemsize
    sub = max(8, 32 // itemsize)
    target_rows = max(sub, _TARGET_BLOCK_BYTES // (LANES * itemsize))
    if rows > _CHUNK_ROWS:
        tile_m = min(target_rows, _round_up(rows, _CHUNK_ROWS))
    else:
        tile_m = _round_up(rows, sub)
    chunk_rows = tile_m if tile_m <= _CHUNK_ROWS else _CHUNK_ROWS
    n_tiles = (rows + tile_m - 1) // tile_m
    needs_mask = (n_tiles * tile_m != rows)

    args = []
    in_specs = []
    if has_tail:
        # Raw moments of the <128-element remainder (tiny, plain JAX);
        # the 128-aligned prefix is streamed through the kernel.
        xt = xf[rows * LANES:].astype(jnp.float32)
        yt = yf[rows * LANES:].astype(jnp.float32)
        tail = jnp.stack([jnp.sum(xt), jnp.sum(yt), jnp.sum(xt * xt),
                          jnp.sum(yt * yt), jnp.sum(xt * yt)])
        args.append(tail)
        in_specs.append(pl.BlockSpec(memory_space=pltpu.MemorySpace.SMEM))
        xf = xf[: rows * LANES]
        yf = yf[: rows * LANES]

    x2 = xf.reshape(rows, LANES)      # zero-copy view when size % 128 == 0
    y2 = yf.reshape(rows, LANES)
    args += [x2, y2]
    in_specs += [pl.BlockSpec((tile_m, LANES), lambda i: (i, 0)),
                 pl.BlockSpec((tile_m, LANES), lambda i: (i, 0))]

    kernel = functools.partial(
        _ccc_kernel, n_valid=n_valid, rows=rows, eps=float(eps),
        tile_m=tile_m, chunk_rows=chunk_rows,
        needs_mask=needs_mask, has_tail=has_tail)

    out = pl.pallas_call(
        kernel,
        out_shape=jax.ShapeDtypeStruct((1, 1), jnp.float32),
        grid_spec=pltpu.PrefetchScalarGridSpec(
            num_scalar_prefetch=0,
            grid=(n_tiles,),
            in_specs=in_specs,
            out_specs=pl.BlockSpec((1, 1), lambda i: (0, 0)),
            scratch_shapes=(
                [pltpu.VMEM((8, LANES), jnp.float32) for _ in range(5)]
                + [pltpu.VMEM((1, 1), jnp.float32),      # x0 pilot shift
                   pltpu.VMEM((1, 1), jnp.float32)]),    # y0 pilot shift
        ),
        compiler_params=pltpu.CompilerParams(
            dimension_semantics=("arbitrary",),
            vmem_limit_bytes=32 * 1024 * 1024),
    )(*args)
    return out[0, 0]


def ccc_loss_ref(x, y, eps: float = 1e-8):
    """Pure-JAX reference mirroring the PyTorch module exactly."""
    x = x.astype(jnp.float32)
    y = y.astype(jnp.float32)
    vx = x - jnp.mean(x)
    vy = y - jnp.mean(y)
    rho = jnp.sum(vx * vy) / (
        jnp.sqrt(jnp.sum(vx ** 2)) * jnp.sqrt(jnp.sum(vy ** 2)) + eps)
    x_m = jnp.mean(x)
    y_m = jnp.mean(y)
    n = x.size
    x_s = jnp.sqrt(jnp.sum((x - x_m) ** 2) / (n - 1))  # unbiased like torch.std
    y_s = jnp.sqrt(jnp.sum((y - y_m) ** 2) / (n - 1))
    ccc = 2 * rho * x_s * y_s / (x_s ** 2 + y_s ** 2 + (x_m - y_m) ** 2)
    return 1 - ccc


if __name__ == "__main__":
    key = jax.random.PRNGKey(0)
    kx, ky = jax.random.split(key)

    # Small NCHW-like inputs (the loss is a full reduction; layout-agnostic).
    x = jax.random.normal(kx, (2, 4, 16, 16), dtype=jnp.float32)
    y = 0.8 * x + 0.2 * jax.random.normal(ky, (2, 4, 16, 16), dtype=jnp.float32)

    loss = ccc_loss(x, y)
    jax.block_until_ready(loss)
    ref = ccc_loss_ref(x, y)
    assert jnp.allclose(loss, ref, rtol=1e-5, atol=1e-5), (loss, ref)

    # Also exercise the unaligned path (size % 128 != 0 -> edge-block row mask
    # + SMEM tail-moment correction, no full-array pad).
    kx2, ky2 = jax.random.split(ky)
    xu = jax.random.normal(kx2, (2, 3, 67), dtype=jnp.float32)
    yu = 0.5 * xu + 0.5 * jax.random.normal(ky2, (2, 3, 67), dtype=jnp.float32)
    loss_u = ccc_loss(xu, yu)
    jax.block_until_ready(loss_u)
    ref_u = ccc_loss_ref(xu, yu)
    assert jnp.allclose(loss_u, ref_u, rtol=1e-5, atol=1e-5), (loss_u, ref_u)

    print("KERNEL_OK")
</pallas_src>

<mosaic_0001>
module attributes {stable_mosaic.version = 11 : i64} {
  func.func @_ccc_kernel(%arg0: i32, %arg1: memref<16x128xf32, #tpu.memory_space<vmem>>, %arg2: memref<16x128xf32, #tpu.memory_space<vmem>>, %arg3: memref<1x1xf32, #tpu.memory_space<vmem>>, %arg4: memref<8x128xf32, #tpu.memory_space<vmem>>, %arg5: memref<8x128xf32, #tpu.memory_space<vmem>>, %arg6: memref<8x128xf32, #tpu.memory_space<vmem>>, %arg7: memref<8x128xf32, #tpu.memory_space<vmem>>, %arg8: memref<8x128xf32, #tpu.memory_space<vmem>>, %arg9: memref<1x1xf32, #tpu.memory_space<vmem>>, %arg10: memref<1x1xf32, #tpu.memory_space<vmem>>) attributes {dimension_semantics = [#tpu.dimension_semantics<arbitrary>], iteration_bounds = array<i64: 1>, scalar_prefetch = 0 : i64, scratch_operands = 7 : i64, tpu.core_type = #tpu.core_type<tc>, window_params = [{transform_indices = @transform_0, window_bounds = array<i64: 16, 128>}, {transform_indices = @transform_1, window_bounds = array<i64: 16, 128>}, {pipeline_mode = #tpu.pipeline_mode<synchronous>, transform_indices = @transform_2, window_bounds = array<i64: 1, 1>}]} {
    %c0_i32 = arith.constant 0 : i32
    %0 = arith.cmpi eq, %arg0, %c0_i32 : i32
    %1 = arith.extui %0 : i1 to i32
    %c0_i32_0 = arith.constant 0 : i32
    %2 = arith.cmpi ne, %1, %c0_i32_0 : i32
    scf.if %2 {
      %cst_34 = arith.constant 0.000000e+00 : f32
      %39 = vector.broadcast %cst_34 : f32 to vector<8x128xf32>
      %c0_35 = arith.constant 0 : index
      %c0_36 = arith.constant 0 : index
      %40 = vector.load %arg4[%c0_35, %c0_36] : memref<8x128xf32, #tpu.memory_space<vmem>>, vector<8x128xf32>
      tpu.vector_store %arg4[%c0_35, %c0_36], %39 {strides = array<i32>} : memref<8x128xf32, #tpu.memory_space<vmem>>, vector<8x128xf32>,
      %cst_37 = arith.constant 0.000000e+00 : f32
      %41 = vector.broadcast %cst_37 : f32 to vector<8x128xf32>
      %c0_38 = arith.constant 0 : index
      %c0_39 = arith.constant 0 : index
      %42 = vector.load %arg5[%c0_38, %c0_39] : memref<8x128xf32, #tpu.memory_space<vmem>>, vector<8x128xf32>
      tpu.vector_store %arg5[%c0_38, %c0_39], %41 {strides = array<i32>} : memref<8x128xf32, #tpu.memory_space<vmem>>, vector<8x128xf32>,
      %cst_40 = arith.constant 0.000000e+00 : f32
      %43 = vector.broadcast %cst_40 : f32 to vector<8x128xf32>
      %c0_41 = arith.constant 0 : index
      %c0_42 = arith.constant 0 : index
      %44 = vector.load %arg6[%c0_41, %c0_42] : memref<8x128xf32, #tpu.memory_space<vmem>>, vector<8x128xf32>
      tpu.vector_store %arg6[%c0_41, %c0_42], %43 {strides = array<i32>} : memref<8x128xf32, #tpu.memory_space<vmem>>, vector<8x128xf32>,
      %cst_43 = arith.constant 0.000000e+00 : f32
      %45 = vector.broadcast %cst_43 : f32 to vector<8x128xf32>
      %c0_44 = arith.constant 0 : index
      %c0_45 = arith.constant 0 : index
      %46 = vector.load %arg7[%c0_44, %c0_45] : memref<8x128xf32, #tpu.memory_space<vmem>>, vector<8x128xf32>
      tpu.vector_store %arg7[%c0_44, %c0_45], %45 {strides = array<i32>} : memref<8x128xf32, #tpu.memory_space<vmem>>, vector<8x128xf32>,
      %cst_46 = arith.constant 0.000000e+00 : f32
      %47 = vector.broadcast %cst_46 : f32 to vector<8x128xf32>
      %c0_47 = arith.constant 0 : index
      %c0_48 = arith.constant 0 : index
      %48 = vector.load %arg8[%c0_47, %c0_48] : memref<8x128xf32, #tpu.memory_space<vmem>>, vector<8x128xf32>
      tpu.vector_store %arg8[%c0_47, %c0_48], %47 {strides = array<i32>} : memref<8x128xf32, #tpu.memory_space<vmem>>, vector<8x128xf32>,
      %c0_49 = arith.constant 0 : index
      %c0_50 = arith.constant 0 : index
      %49 = vector.load %arg1[%c0_49, %c0_50] : memref<16x128xf32, #tpu.memory_space<vmem>>, vector<1x1xf32>
      %c0_51 = arith.constant 0 : index
      %c0_52 = arith.constant 0 : index
      %50 = vector.load %arg9[%c0_51, %c0_52] : memref<1x1xf32, #tpu.memory_space<vmem>>, vector<1x1xf32>
      tpu.vector_store %arg9[%c0_51, %c0_52], %49 {strides = array<i32>} : memref<1x1xf32, #tpu.memory_space<vmem>>, vector<1x1xf32>,
      %c0_53 = arith.constant 0 : index
      %c0_54 = arith.constant 0 : index
      %51 = vector.load %arg2[%c0_53, %c0_54] : memref<16x128xf32, #tpu.memory_space<vmem>>, vector<1x1xf32>
      %c0_55 = arith.constant 0 : index
      %c0_56 = arith.constant 0 : index
      %52 = vector.load %arg10[%c0_55, %c0_56] : memref<1x1xf32, #tpu.memory_space<vmem>>, vector<1x1xf32>
      tpu.vector_store %arg10[%c0_55, %c0_56], %51 {strides = array<i32>} : memref<1x1xf32, #tpu.memory_space<vmem>>, vector<1x1xf32>,
    } else {
    }
    %c0 = arith.constant 0 : index
    %c0_1 = arith.constant 0 : index
    %3 = vector.load %arg9[%c0, %c0_1] : memref<1x1xf32, #tpu.memory_space<vmem>>, vector<1x1xf32>
    %c0_2 = arith.constant 0 : index
    %c0_3 = arith.constant 0 : index
    %4 = vector.load %arg10[%c0_2, %c0_3] : memref<1x1xf32, #tpu.memory_space<vmem>>, vector<1x1xf32>
    %c0_4 = arith.constant 0 : index
    %c0_5 = arith.constant 0 : index
    %5 = vector.load %arg1[%c0_4, %c0_5] : memref<16x128xf32, #tpu.memory_space<vmem>>, vector<16x128xf32>
    %6 = vector.broadcast %3 : vector<1x1xf32> to vector<16x128xf32>
    %7 = arith.subf %5, %6 : vector<16x128xf32>
    %c0_6 = arith.constant 0 : index
    %c0_7 = arith.constant 0 : index
    %8 = vector.load %arg2[%c0_6, %c0_7] : memref<16x128xf32, #tpu.memory_space<vmem>>, vector<16x128xf32>
    %9 = vector.broadcast %4 : vector<1x1xf32> to vector<16x128xf32>
    %10 = arith.subf %8, %9 : vector<16x128xf32>
    %11 = vector.shape_cast %7 : vector<16x128xf32> to vector<2x8x128xf32>
    %12 = vector.shape_cast %10 : vector<16x128xf32> to vector<2x8x128xf32>
    %c0_8 = arith.constant 0 : index
    %c0_9 = arith.constant 0 : index
    %13 = vector.load %arg4[%c0_8, %c0_9] : memref<8x128xf32, #tpu.memory_space<vmem>>, vector<8x128xf32>
    %cst = arith.constant dense<0.000000e+00> : vector<8x128xf32>
    %14 = vector.multi_reduction <add>, %11, %cst [0] : vector<2x8x128xf32> to vector<8x128xf32>
    %15 = arith.addf %13, %14 : vector<8x128xf32>
    %c0_10 = arith.constant 0 : index
    %c0_11 = arith.constant 0 : index
    %16 = vector.load %arg4[%c0_10, %c0_11] : memref<8x128xf32, #tpu.memory_space<vmem>>, vector<8x128xf32>
    tpu.vector_store %arg4[%c0_10, %c0_11], %15 {strides = array<i32>} : memref<8x128xf32, #tpu.memory_space<vmem>>, vector<8x128xf32>,
    %c0_12 = arith.constant 0 : index
    %c0_13 = arith.constant 0 : index
    %17 = vector.load %arg5[%c0_12, %c0_13] : memref<8x128xf32, #tpu.memory_space<vmem>>, vector<8x128xf32>
    %cst_14 = arith.constant dense<0.000000e+00> : vector<8x128xf32>
    %18 = vector.multi_reduction <add>, %12, %cst_14 [0] : vector<2x8x128xf32> to vector<8x128xf32>
    %19 = arith.addf %17, %18 : vector<8x128xf32>
    %c0_15 = arith.constant 0 : index
    %c0_16 = arith.constant 0 : index
    %20 = vector.load %arg5[%c0_15, %c0_16] : memref<8x128xf32, #tpu.memory_space<vmem>>, vector<8x128xf32>
    tpu.vector_store %arg5[%c0_15, %c0_16], %19 {strides = array<i32>} : memref<8x128xf32, #tpu.memory_space<vmem>>, vector<8x128xf32>,
    %c0_17 = arith.constant 0 : index
    %c0_18 = arith.constant 0 : index
    %21 = vector.load %arg6[%c0_17, %c0_18] : memref<8x128xf32, #tpu.memory_space<vmem>>, vector<8x128xf32>
    %22 = arith.mulf %11, %11 : vector<2x8x128xf32>
    %cst_19 = arith.constant dense<0.000000e+00> : vector<8x128xf32>
    %23 = vector.multi_reduction <add>, %22, %cst_19 [0] : vector<2x8x128xf32> to vector<8x128xf32>
    %24 = arith.addf %21, %23 : vector<8x128xf32>
    %c0_20 = arith.constant 0 : index
    %c0_21 = arith.constant 0 : index
    %25 = vector.load %arg6[%c0_20, %c0_21] : memref<8x128xf32, #tpu.memory_space<vmem>>, vector<8x128xf32>
    tpu.vector_store %arg6[%c0_20, %c0_21], %24 {strides = array<i32>} : memref<8x128xf32, #tpu.memory_space<vmem>>, vector<8x128xf32>,
    %c0_22 = arith.constant 0 : index
    %c0_23 = arith.constant 0 : index
    %26 = vector.load %arg7[%c0_22, %c0_23] : memref<8x128xf32, #tpu.memory_space<vmem>>, vector<8x128xf32>
    %27 = arith.mulf %12, %12 : vector<2x8x128xf32>
    %cst_24 = arith.constant dense<0.000000e+00> : vector<8x128xf32>
    %28 = vector.multi_reduction <add>, %27, %cst_24 [0] : vector<2x8x128xf32> to vector<8x128xf32>
    %29 = arith.addf %26, %28 : vector<8x128xf32>
    %c0_25 = arith.constant 0 : index
    %c0_26 = arith.constant 0 : index
    %30 = vector.load %arg7[%c0_25, %c0_26] : memref<8x128xf32, #tpu.memory_space<vmem>>, vector<8x128xf32>
    tpu.vector_store %arg7[%c0_25, %c0_26], %29 {strides = array<i32>} : memref<8x128xf32, #tpu.memory_space<vmem>>, vector<8x128xf32>,
    %c0_27 = arith.constant 0 : index
    %c0_28 = arith.constant 0 : index
    %31 = vector.load %arg8[%c0_27, %c0_28] : memref<8x128xf32, #tpu.memory_space<vmem>>, vector<8x128xf32>
    %32 = arith.mulf %11, %12 : vector<2x8x128xf32>
    %cst_29 = arith.constant dense<0.000000e+00> : vector<8x128xf32>
    %33 = vector.multi_reduction <add>, %32, %cst_29 [0] : vector<2x8x128xf32> to vector<8x128xf32>
    %34 = arith.addf %31, %33 : vector<8x128xf32>
    %c0_30 = arith.constant 0 : index
    %c0_31 = arith.constant 0 : index
    %35 = vector.load %arg8[%c0_30, %c0_31] : memref<8x128xf32, #tpu.memory_space<vmem>>, vector<8x128xf32>
    tpu.vector_store %arg8[%c0_30, %c0_31], %34 {strides = array<i32>} : memref<8x128xf32, #tpu.memory_space<vmem>>, vector<8x128xf32>,
    %c0_i32_32 = arith.constant 0 : i32
    %36 = arith.cmpi eq, %arg0, %c0_i32_32 : i32
    %37 = arith.extui %36 : i1 to i32
    %c0_i32_33 = arith.constant 0 : i32
    %38 = arith.cmpi ne, %37, %c0_i32_33 : i32
    scf.if %38 {
      %c0_34 = arith.constant 0 : index
      %c0_35 = arith.constant 0 : index
      %39 = vector.load %arg4[%c0_34, %c0_35] : memref<8x128xf32, #tpu.memory_space<vmem>>, vector<8x128xf32>
      %cst_36 = arith.constant dense<0.000000e+00> : vector<128xf32>
      %40 = vector.multi_reduction <add>, %39, %cst_36 [0] : vector<8x128xf32> to vector<128xf32>
      %41 = vector.shape_cast %40 : vector<128xf32> to vector<1x128xf32>
      %cst_37 = arith.constant dense<0.000000e+00> : vector<1xf32>
      %42 = vector.multi_reduction <add>, %41, %cst_37 [1] : vector<1x128xf32> to vector<1xf32>
      %43 = vector.shape_cast %42 : vector<1xf32> to vector<1x1xf32>
      %c0_38 = arith.constant 0 : index
      %c0_39 = arith.constant 0 : index
      %44 = vector.load %arg5[%c0_38, %c0_39] : memref<8x128xf32, #tpu.memory_space<vmem>>, vector<8x128xf32>
      %cst_40 = arith.constant dense<0.000000e+00> : vector<128xf32>
      %45 = vector.multi_reduction <add>, %44, %cst_40 [0] : vector<8x128xf32> to vector<128xf32>
      %46 = vector.shape_cast %45 : vector<128xf32> to vector<1x128xf32>
      %cst_41 = arith.constant dense<0.000000e+00> : vector<1xf32>
      %47 = vector.multi_reduction <add>, %46, %cst_41 [1] : vector<1x128xf32> to vector<1xf32>
      %48 = vector.shape_cast %47 : vector<1xf32> to vector<1x1xf32>
      %c0_42 = arith.constant 0 : index
      %c0_43 = arith.constant 0 : index
      %49 = vector.load %arg6[%c0_42, %c0_43] : memref<8x128xf32, #tpu.memory_space<vmem>>, vector<8x128xf32>
      %cst_44 = arith.constant dense<0.000000e+00> : vector<128xf32>
      %50 = vector.multi_reduction <add>, %49, %cst_44 [0] : vector<8x128xf32> to vector<128xf32>
      %51 = vector.shape_cast %50 : vector<128xf32> to vector<1x128xf32>
      %cst_45 = arith.constant dense<0.000000e+00> : vector<1xf32>
      %52 = vector.multi_reduction <add>, %51, %cst_45 [1] : vector<1x128xf32> to vector<1xf32>
      %53 = vector.shape_cast %52 : vector<1xf32> to vector<1x1xf32>
      %c0_46 = arith.constant 0 : index
      %c0_47 = arith.constant 0 : index
      %54 = vector.load %arg7[%c0_46, %c0_47] : memref<8x128xf32, #tpu.memory_space<vmem>>, vector<8x128xf32>
      %cst_48 = arith.constant dense<0.000000e+00> : vector<128xf32>
      %55 = vector.multi_reduction <add>, %54, %cst_48 [0] : vector<8x128xf32> to vector<128xf32>
      %56 = vector.shape_cast %55 : vector<128xf32> to vector<1x128xf32>
      %cst_49 = arith.constant dense<0.000000e+00> : vector<1xf32>
      %57 = vector.multi_reduction <add>, %56, %cst_49 [1] : vector<1x128xf32> to vector<1xf32>
      %58 = vector.shape_cast %57 : vector<1xf32> to vector<1x1xf32>
      %c0_50 = arith.constant 0 : index
      %c0_51 = arith.constant 0 : index
      %59 = vector.load %arg8[%c0_50, %c0_51] : memref<8x128xf32, #tpu.memory_space<vmem>>, vector<8x128xf32>
      %cst_52 = arith.constant dense<0.000000e+00> : vector<128xf32>
      %60 = vector.multi_reduction <add>, %59, %cst_52 [0] : vector<8x128xf32> to vector<128xf32>
      %61 = vector.shape_cast %60 : vector<128xf32> to vector<1x128xf32>
      %cst_53 = arith.constant dense<0.000000e+00> : vector<1xf32>
      %62 = vector.multi_reduction <add>, %61, %cst_53 [1] : vector<1x128xf32> to vector<1xf32>
      %63 = vector.shape_cast %62 : vector<1xf32> to vector<1x1xf32>
      %cst_54 = arith.constant 2.048000e+03 : f32
      %64 = vector.broadcast %cst_54 : f32 to vector<1x1xf32>
      %65 = arith.divf %43, %64 : vector<1x1xf32>
      %cst_55 = arith.constant 2.048000e+03 : f32
      %66 = vector.broadcast %cst_55 : f32 to vector<1x1xf32>
      %67 = arith.divf %48, %66 : vector<1x1xf32>
      %cst_56 = arith.constant 2.048000e+03 : f32
      %68 = vector.broadcast %cst_56 : f32 to vector<1x1xf32>
      %69 = arith.mulf %68, %65 : vector<1x1xf32>
      %70 = arith.mulf %69, %65 : vector<1x1xf32>
      %71 = arith.subf %53, %70 : vector<1x1xf32>
      %cst_57 = arith.constant 2.048000e+03 : f32
      %72 = vector.broadcast %cst_57 : f32 to vector<1x1xf32>
      %73 = arith.mulf %72, %67 : vector<1x1xf32>
      %74 = arith.mulf %73, %67 : vector<1x1xf32>
      %75 = arith.subf %58, %74 : vector<1x1xf32>
      %cst_58 = arith.constant 2.048000e+03 : f32
      %76 = vector.broadcast %cst_58 : f32 to vector<1x1xf32>
      %77 = arith.mulf %76, %65 : vector<1x1xf32>
      %78 = arith.mulf %77, %67 : vector<1x1xf32>
      %79 = arith.subf %63, %78 : vector<1x1xf32>
      %80 = math.sqrt %71 : vector<1x1xf32>
      %81 = math.sqrt %75 : vector<1x1xf32>
      %82 = arith.mulf %80, %81 : vector<1x1xf32>
      %cst_59 = arith.constant 9.99999993E-9 : f32
      %83 = vector.broadcast %cst_59 : f32 to vector<1x1xf32>
      %84 = arith.addf %82, %83 : vector<1x1xf32>
      %85 = arith.divf %79, %84 : vector<1x1xf32>
      %cst_60 = arith.constant 2.048000e+03 : f32
      %cst_61 = arith.constant 1.000000e+00 : f32
      %86 = arith.subf %cst_60, %cst_61 : f32
      %87 = vector.broadcast %86 : f32 to vector<1x1xf32>
      %88 = arith.divf %71, %87 : vector<1x1xf32>
      %cst_62 = arith.constant 2.048000e+03 : f32
      %cst_63 = arith.constant 1.000000e+00 : f32
      %89 = arith.subf %cst_62, %cst_63 : f32
      %90 = vector.broadcast %89 : f32 to vector<1x1xf32>
      %91 = arith.divf %75, %90 : vector<1x1xf32>
      %92 = math.sqrt %88 : vector<1x1xf32>
      %93 = math.sqrt %91 : vector<1x1xf32>
      %94 = arith.subf %65, %67 : vector<1x1xf32>
      %95 = arith.subf %3, %4 : vector<1x1xf32>
      %96 = arith.addf %94, %95 : vector<1x1xf32>
      %cst_64 = arith.constant 2.000000e+00 : f32
      %97 = vector.broadcast %cst_64 : f32 to vector<1x1xf32>
      %98 = arith.mulf %97, %85 : vector<1x1xf32>
      %99 = arith.mulf %98, %92 : vector<1x1xf32>
      %100 = arith.mulf %99, %93 : vector<1x1xf32>
      %101 = arith.addf %88, %91 : vector<1x1xf32>
      %102 = arith.mulf %96, %96 : vector<1x1xf32>
      %103 = arith.addf %101, %102 : vector<1x1xf32>
      %104 = arith.divf %100, %103 : vector<1x1xf32>
      %cst_65 = arith.constant 1.000000e+00 : f32
      %105 = vector.broadcast %cst_65 : f32 to vector<1x1xf32>
      %106 = arith.subf %105, %104 : vector<1x1xf32>
      %c0_66 = arith.constant 0 : index
      %c0_67 = arith.constant 0 : index
      %107 = vector.load %arg3[%c0_66, %c0_67] : memref<1x1xf32, #tpu.memory_space<vmem>>, vector<1x1xf32>
      tpu.vector_store %arg3[%c0_66, %c0_67], %106 {strides = array<i32>} : memref<1x1xf32, #tpu.memory_space<vmem>>, vector<1x1xf32>,
    } else {
    }
    return
  }
  func.func @transform_0(%arg0: i32) -> (i32, i32) {
    %c0_i32 = arith.constant 0 : i32
    %c0_i32_0 = arith.constant 0 : i32
    return %arg0, %c0_i32 : i32, i32
  }
  func.func @transform_1(%arg0: i32) -> (i32, i32) {
    %c0_i32 = arith.constant 0 : i32
    %c0_i32_0 = arith.constant 0 : i32
    return %arg0, %c0_i32 : i32, i32
  }
  func.func @transform_2(%arg0: i32) -> (i32, i32) {
    %c0_i32 = arith.constant 0 : i32
    %c0_i32_0 = arith.constant 0 : i32
    %c0_i32_1 = arith.constant 0 : i32
    return %c0_i32, %c0_i32_0 : i32, i32
  }
}

</mosaic_0001>

<llo_original>
// kernel: tpu_custom_call.1
$region0: #{tpu_custom_call.1}
  #allocation0 [shape = 'u32[]', space=smem, size = 0x4, offset = 0x4, fixed_abs, tag = 'smem constant byte address 0x4 - core index']
  #allocation1 [shape = 'u32[144,128]{1,0:T(1,128)}', space=vmem, size = 0x12000, scoped, tag = 'internal scratch']
  #allocation2 [shape = 'f32[8,128]{1,0:T(8,128)}', space=vmem, size = 0x1000, scoped, tag = 'scratch operand']
  #allocation3 [shape = 'f32[8,128]{1,0:T(8,128)}', space=vmem, size = 0x1000, scoped, tag = 'scratch operand']
  #allocation4 [shape = 'f32[8,128]{1,0:T(8,128)}', space=vmem, size = 0x1000, scoped, tag = 'scratch operand']
  #allocation5 [shape = 'f32[8,128]{1,0:T(8,128)}', space=vmem, size = 0x1000, scoped, tag = 'scratch operand']
  #allocation6 [shape = 'f32[8,128]{1,0:T(8,128)}', space=vmem, size = 0x1000, scoped, tag = 'scratch operand']
  #allocation7 [shape = 'f32[1,1]{1,0:T(1,128)}', space=vmem, size = 0x200, scoped, tag = 'scratch operand']
  #allocation8 [shape = 'f32[1,1]{1,0:T(1,128)}', space=vmem, size = 0x200, scoped, tag = 'scratch operand']
  %s0 = inlined_call_operand.hbm [shape: f32[16,128], index: 0, kind: input, shape index: {}]
  %s1 = inlined_call_operand.hbm [shape: f32[16,128], index: 1, kind: input, shape index: {}]
  %s2 = inlined_call_operand.hbm [shape: f32[1,1], index: 2, kind: output, shape index: {}]
  %s3 = sld [smem:[#allocation0]]
  $region34: #{tpu_custom_call.1} parent=0
    _
  %s5 = ssub.s32 1, %s3
  %s6 = scalar_select 0, %s5, %s3
  $region1: #{tpu_custom_call.1} parent=0
    #allocation9 [shape = 'u8[8192]{0}', space=vmem, size = 0x2000, scoped, tag = 'input window, operand 0, single buffered']
    #allocation10 [shape = 's32[1]{0}', space=sflag, size = 0x4, scoped, tag = 'scoped memory for tpu_custom_call.1']
    #allocation11 [shape = 's32[1]{0}', space=sflag, size = 0x4, scoped, tag = 'scoped memory for tpu_custom_call.1']
    #allocation12 [shape = 'u8[8192]{0}', space=vmem, size = 0x2000, scoped, tag = 'input window, operand 1, single buffered']
    #allocation13 [shape = 's32[1]{0}', space=sflag, size = 0x4, scoped, tag = 'scoped memory for tpu_custom_call.1']
    #allocation14 [shape = 'u8[512]{0}', space=vmem, size = 0x400, scoped, tag = 'output window, operand 0, single buffered']
    %7 = vsyncpa [#allocation10], 0
    %8 = vsyncpa [#allocation13], 0
    %9 = vsyncpa [#allocation11], 0
    // Predicated region
    $region2: #{tpu_custom_call.1} parent=1 // pred_check
      _
    $region3: #{tpu_custom_call.1} parent=1 // pred_check_branch
      %11 = sbr.rel (0) target = $region5
    $region4: #{tpu_custom_call.1} parent=1 // pred_region
      %s13 = ssub.s32 256, 256
      %14 = vsyncadd [#allocation10], %s13
      %s15 = sshll.u32 [#allocation9], 4
      %s16 = int_to_ptr.vmem [resolvable:$true] %s15
      %21 = dma.hbm_to_vmem [thread:$0]  %s0, 256, %s16, [#allocation10], 128, 128, 8
    $region5: #{tpu_custom_call.1} parent=1 // pred_fallthru
      _
    // Predicated region
    $region6: #{tpu_custom_call.1} parent=1 // pred_check
      _
    $region7: #{tpu_custom_call.1} parent=1 // pred_check_branch
      %23 = sbr.rel (0) target = $region9
    $region8: #{tpu_custom_call.1} parent=1 // pred_region
      %s25 = ssub.s32 256, 256
      %26 = vsyncadd [#allocation13], %s25
      %s27 = sshll.u32 [#allocation12], 4
      %s28 = int_to_ptr.vmem [resolvable:$true] %s27
      %33 = dma.hbm_to_vmem [thread:$0]  %s1, 256, %s28, [#allocation13], 128, 128, 8
    $region9: #{tpu_custom_call.1} parent=1 // pred_fallthru
      _
    // Predicated region
    $region10: #{tpu_custom_call.1} parent=1 // pred_check
      _
    $region11: #{tpu_custom_call.1} parent=1 // pred_check_branch
      %35 = sbr.rel (0) target = $region13
    $region12: #{tpu_custom_call.1} parent=1 // pred_region
      %36 = dma.done [#allocation10], 256
    $region13: #{tpu_custom_call.1} parent=1 // pred_fallthru
      _
    // Predicated region
    $region14: #{tpu_custom_call.1} parent=1 // pred_check
      _
    $region15: #{tpu_custom_call.1} parent=1 // pred_check_branch
      %38 = sbr.rel (0) target = $region17
    $region16: #{tpu_custom_call.1} parent=1 // pred_region
      %39 = dma.done [#allocation13], 256
    $region17: #{tpu_custom_call.1} parent=1 // pred_fallthru
      _
    %p40 = scmp.eq.s32.totalorder 0, 0
    // Predicated region
    $region18: #{tpu_custom_call.1} parent=1 // pred_check
      %p41 = pneg %p40
    $region19: #{tpu_custom_call.1} parent=1 // pred_check_branch
      %43 = sbr.rel (%p41) target = $region21
    $region20: #{tpu_custom_call.1} parent=1 // pred_region
      %44 = vst [vmem:[#allocation2] sm:$0xff] 0.0
      %45 = vst [vmem:[#allocation3] sm:$0xff] 0.0
      %46 = vst [vmem:[#allocation4] sm:$0xff] 0.0
      %47 = vst [vmem:[#allocation5] sm:$0xff] 0.0
      %48 = vst [vmem:[#allocation6] sm:$0xff] 0.0
      %v49 = vld [vmem:[#allocation9] sm:$0x1]
      %vm50 = vcmask 0
      %51 = vst.msk [vmem:[#allocation7] sm:$0x1] %vm50, %v49
      %v52 = vld [vmem:[#allocation12] sm:$0x1]
      %53 = vst.msk [vmem:[#allocation8] sm:$0x1] %vm50, %v52
    $region21: #{tpu_custom_call.1} parent=1 // pred_fallthru
      _
    %v54 = vld [vmem:[#allocation7] sm:$0x1]
    %v55 = vld [vmem:[#allocation8] sm:$0x1]
    %v56 = vld [vmem:[#allocation9] sm:$0xff]
    %v57 = vld [vmem:[#allocation9 + $0x8] sm:$0xff]
    %v59 = vlaneseq
    %v60 = vshrl.u32 %v59, 7
    %v61 = vsub.s32 0, %v60
    %v62 = vrot.slane %v54, %v61
    %63 = vset.pattern.permute.xlu0 0
    %64 = vperm.xlu0 %63, %v62
    %v65 = vpop.permute.xlu0 %64
    %v67 = vsub.f32 %v56, %v65
    %v68 = vsub.f32 %v57, %v65
    %v69 = vld [vmem:[#allocation12] sm:$0xff]
    %v70 = vld [vmem:[#allocation12 + $0x8] sm:$0xff]
    %v72 = vlaneseq
    %v73 = vshrl.u32 %v72, 7
    %v74 = vsub.s32 0, %v73
    %v75 = vrot.slane %v55, %v74
    %76 = vset.pattern.permute.xlu0 0
    %77 = vperm.xlu0 %76, %v75
    %v78 = vpop.permute.xlu0 %77
    %v80 = vsub.f32 %v69, %v78
    %v81 = vsub.f32 %v70, %v78
    %v82 = vld [vmem:[#allocation2] sm:$0xff]
    %v83 = vadd.f32 %v67, %v68
    %v84 = vadd.f32 %v82, %v83
    %85 = vst [vmem:[#allocation2] sm:$0xff] %v84
    %v86 = vld [vmem:[#allocation3] sm:$0xff]
    %v87 = vadd.f32 %v80, %v81
    %v88 = vadd.f32 %v86, %v87
    %89 = vst [vmem:[#allocation3] sm:$0xff] %v88
    %v90 = vld [vmem:[#allocation4] sm:$0xff]
    %v91 = vmul.f32 %v67, %v67
    %v92 = vmul.f32 %v68, %v68
    %v93 = vadd.f32 %v91, %v92
    %v94 = vadd.f32 %v90, %v93
    %95 = vst [vmem:[#allocation4] sm:$0xff] %v94
    %v96 = vld [vmem:[#allocation5] sm:$0xff]
    %v97 = vmul.f32 %v80, %v80
    %v98 = vmul.f32 %v81, %v81
    %v99 = vadd.f32 %v97, %v98
    %v100 = vadd.f32 %v96, %v99
    %101 = vst [vmem:[#allocation5] sm:$0xff] %v100
    %v102 = vld [vmem:[#allocation6] sm:$0xff]
    %v103 = vmul.f32 %v67, %v80
    %v104 = vmul.f32 %v68, %v81
    %v105 = vadd.f32 %v103, %v104
    %v106 = vadd.f32 %v102, %v105
    %107 = vst [vmem:[#allocation6] sm:$0xff] %v106
    // Predicated region
    $region22: #{tpu_custom_call.1} parent=1 // pred_check
      %p108 = pneg %p40
    $region23: #{tpu_custom_call.1} parent=1 // pred_check_branch
      %110 = sbr.rel (%p108) target = $region25
    $region24: #{tpu_custom_call.1} parent=1 // pred_region
      %v111 = vld [vmem:[#allocation2] sm:$0xff]
      %v112 = vrot.slane %v111, 4
      %v113 = vadd.f32 %v111, %v112
      %v114 = vrot.slane %v113, 2
      %v115 = vadd.f32 %v113, %v114
      %v116 = vrot.slane %v115, 1
      %v117 = vadd.f32 %v115, %v116
      %118 = vadd.xlane.f32.xlu0 %v117
      %v119 = vpop.xlane.xlu0 %118
      %v120 = vld [vmem:[#allocation3] sm:$0xff]
      %v121 = vrot.slane %v120, 4
      %v122 = vadd.f32 %v120, %v121
      %v123 = vrot.slane %v122, 2
      %v124 = vadd.f32 %v122, %v123
      %v125 = vrot.slane %v124, 1
      %v126 = vadd.f32 %v124, %v125
      %127 = vadd.xlane.f32.xlu0 %v126
      %v128 = vpop.xlane.xlu0 %127
      %v129 = vld [vmem:[#allocation4] sm:$0xff]
      %v130 = vrot.slane %v129, 4
      %v131 = vadd.f32 %v129, %v130
      %v132 = vrot.slane %v131, 2
      %v133 = vadd.f32 %v131, %v132
      %v134 = vrot.slane %v133, 1
      %v135 = vadd.f32 %v133, %v134
      %136 = vadd.xlane.f32.xlu0 %v135
      %v137 = vpop.xlane.xlu0 %136
      %v138 = vld [vmem:[#allocation5] sm:$0xff]
      %v139 = vrot.slane %v138, 4
      %v140 = vadd.f32 %v138, %v139
      %v141 = vrot.slane %v140, 2
      %v142 = vadd.f32 %v140, %v141
      %v143 = vrot.slane %v142, 1
      %v144 = vadd.f32 %v142, %v143
      %145 = vadd.xlane.f32.xlu0 %v144
      %v146 = vpop.xlane.xlu0 %145
      %v147 = vld [vmem:[#allocation6] sm:$0xff]
      %v148 = vrot.slane %v147, 4
      %v149 = vadd.f32 %v147, %v148
      %v150 = vrot.slane %v149, 2
      %v151 = vadd.f32 %v149, %v150
      %v152 = vrot.slane %v151, 1
      %v153 = vadd.f32 %v151, %v152
      %154 = vadd.xlane.f32.xlu0 %v153
      %v155 = vpop.xlane.xlu0 %154
      %v156 = vrcp.pop 2048.0
      %v157 = vmul.f32 %v119, %v156
      %v158 = vmul.f32 %v128, %v156
      %v159 = vmul.f32 %v157, 2048.0
      %v160 = vmul.f32 %v159, %v157
      %v161 = vsub.f32 %v137, %v160
      %v162 = vmul.f32 %v158, 2048.0
      %v163 = vmul.f32 %v162, %v158
      %v164 = vsub.f32 %v146, %v163
      %v165 = vmul.f32 %v159, %v158
      %v166 = vsub.f32 %v155, %v165
      %v167 = vrsqrt.pop %v161
      %v168 = vmul.f32 %v161, %v167
      %vm169 = vcmp.eq.f32.partialorder %v161, inf
      %v170 = vsel %vm169, %v161, %v168
      %vm171 = vcmp.eq.f32.partialorder %v161, 0.0
      %v172 = vand.u32 %v161, 2147483648
      %v173 = vsel %vm171, %v172, %v170
      %v174 = vrsqrt.pop %v164
      %v175 = vmul.f32 %v164, %v174
      %vm176 = vcmp.eq.f32.partialorder %v164, inf
      %v177 = vsel %vm176, %v164, %v175
      %vm178 = vcmp.eq.f32.partialorder %v164, 0.0
      %v179 = vand.u32 %v164, 2147483648
      %v180 = vsel %vm178, %v179, %v177
      %v181 = vmul.f32 %v173, %v180
      %v182 = vadd.f32 %v181, 1e-08
      %v183 = vrcp.pop %v182
      %v184 = vmul.f32 %v166, %v183
      %v185 = vrcp.pop 2047.0
      %v186 = vmul.f32 %v161, %v185
      %v187 = vmul.f32 %v164, %v185
      %v188 = vrsqrt.pop %v186
      %v189 = vmul.f32 %v186, %v188
      %vm190 = vcmp.eq.f32.partialorder %v186, inf
      %v191 = vsel %vm190, %v186, %v189
      %vm192 = vcmp.eq.f32.partialorder %v186, 0.0
      %v193 = vand.u32 %v186, 2147483648
      %v194 = vsel %vm192, %v193, %v191
      %v195 = vrsqrt.pop %v187
      %v196 = vmul.f32 %v187, %v195
      %vm197 = vcmp.eq.f32.partialorder %v187, inf
      %v198 = vsel %vm197, %v187, %v196
      %vm199 = vcmp.eq.f32.partialorder %v187, 0.0
      %v200 = vand.u32 %v187, 2147483648
      %v201 = vsel %vm199, %v200, %v198
      %v202 = vsub.f32 %v157, %v158
      %v203 = vsub.f32 %v54, %v55
      %v204 = vadd.f32 %v202, %v203
      %v205 = vmul.f32 %v184, 2.0
      %v206 = vmul.f32 %v205, %v194
      %v207 = vmul.f32 %v206, %v201
      %v208 = vadd.f32 %v186, %v187
      %v209 = vmul.f32 %v204, %v204
      %v210 = vadd.f32 %v208, %v209
      %v211 = vrcp.pop %v210
      %v212 = vmul.f32 %v207, %v211
      %v213 = vsub.f32 1.0, %v212
      %vm214 = vcmask 0
      %215 = vst.msk [vmem:[#allocation14] sm:$0x1] %vm214, %v213
    $region25: #{tpu_custom_call.1} parent=1 // pred_fallthru
      _
    // Predicated region
    $region26: #{tpu_custom_call.1} parent=1 // pred_check
      _
    $region27: #{tpu_custom_call.1} parent=1 // pred_check_branch
      %217 = sbr.rel (0) target = $region29
    $region28: #{tpu_custom_call.1} parent=1 // pred_region
      %s219 = ssub.s32 16, 16
      %220 = vsyncadd [#allocation11], %s219
      %s222 = sshll.u32 [#allocation14], 4
      %s223 = int_to_ptr.vmem [resolvable:$true] %s222
      %225 = dma.vmem_to_hbm [thread:$0]  %s223, 16, %s2, [#allocation11]
    $region29: #{tpu_custom_call.1} parent=1 // pred_fallthru
      _
    // Predicated region
    $region30: #{tpu_custom_call.1} parent=1 // pred_check
      _
    $region31: #{tpu_custom_call.1} parent=1 // pred_check_branch
      %227 = sbr.rel (0) target = $region33
    $region32: #{tpu_custom_call.1} parent=1 // pred_region
      %228 = dma.done [#allocation11], 16
    $region33: #{tpu_custom_call.1} parent=1 // pred_fallthru
      _
    %229 = vsyncpa [#allocation10], 1
    %230 = vsyncpa [#allocation13], 1
    %231 = vsyncpa [#allocation11], 1

</llo_original>
